<compile_context>
chip_gen: v6e
topology: v6e:2x2x1
jax: 0.10.0
libtpu: 0.0.40
codegen_flags: <defaults>
</compile_context>

<pallas_src>
import functools

import jax
import jax.numpy as jnp
from jax.experimental import pallas as pl
from jax.experimental.pallas import tpu as pltpu

PATCH = 16
CHANNELS = 3
HIDDEN = 64
HIDDEN_PAD = 128                      # lane-dense hidden width (zero padding -> exact)
LANE = 128
K = CHANNELS * PATCH * PATCH          # 768 = 6*128 -> lane-dense first contraction
DEFAULT_TILE_ROWS = 2048              # tunable target rows per grid step
VMEM_BUDGET_BYTES = 40 * 1024 * 1024  # working-set cap: fits v7x 64 MiB/TC w/ headroom
VMEM_LIMIT_CAP = 48 * 1024 * 1024


def _round_up(x, m):
    return ((x + m - 1) // m) * m


def _encoder_kernel(p_ref, w1_ref, b1_ref, w2_ref, b2_ref, o_ref):
    # p_ref : (tile_rows, K)        bf16 patch-matrix tile
    # w1_ref: (K, HIDDEN_PAD)       bf16, zero-padded cols [HIDDEN:)
    # b1_ref: (1, HIDDEN_PAD)       f32,  zero-padded
    # w2_ref: (HIDDEN_PAD, E_pad)   bf16, zero rows [HIDDEN:), zero cols [E:)
    # b2_ref: (1, E_pad)            f32,  zero-padded
    # o_ref : (tile_rows, E_pad)    f32 or bf16
    h = jnp.dot(p_ref[...], w1_ref[...], preferred_element_type=jnp.float32)
    h = jnp.maximum(h + b1_ref[...], 0.0)          # bias + ReLU in f32 (v5e-safe)
    y = jnp.dot(h.astype(jnp.bfloat16), w2_ref[...],
                preferred_element_type=jnp.float32)
    o_ref[...] = (y + b2_ref[...]).astype(o_ref.dtype)


def _plan_tiles(N, E_pad, tile_rows_target, out_itemsize):
    """Row-tile size / grid / VMEM limit against an explicit working-set budget."""
    # Weights (double-buffered by the pipeline): W1, b1, W2, b2.
    fixed = 2 * (K * HIDDEN_PAD * 2 + HIDDEN_PAD * 4
                 + HIDDEN_PAD * E_pad * 2 + E_pad * 4)
    # Per-row bytes: double-buffered bf16 input tile + double-buffered output tile
    # + in-kernel temporaries (h f32, h bf16, y f32).
    per_row = (2 * K * 2) + (2 * E_pad * out_itemsize) \
        + HIDDEN_PAD * (4 + 2) + E_pad * 4
    max_rows = max(16, ((VMEM_BUDGET_BYTES - fixed) // per_row) // 16 * 16)
    target = max(16, min(_round_up(tile_rows_target, 16), max_rows))

    n_min = _round_up(N, 16)                       # bf16 sublane packing
    if n_min <= target:
        # Single tile: pad the (tiny) remainder explicitly so the block never
        # exceeds the input array.
        tile_rows, grid_len, pad_rows = n_min, 1, n_min - N
    else:
        num_tiles = pl.cdiv(N, target)
        num_tiles += num_tiles % 2                 # even -> both v7x TCs stay busy
        tile_rows = _round_up(pl.cdiv(N, num_tiles), 16)
        grid_len, pad_rows = pl.cdiv(N, tile_rows), 0   # ragged last tile: OOB read

    working_set = fixed + tile_rows * per_row
    vmem_limit = max(32 * 1024 * 1024,
                     min(working_set + (4 << 20), VMEM_LIMIT_CAP))
    return tile_rows, grid_len, pad_rows, vmem_limit


@functools.partial(jax.jit,
                   static_argnames=("embed_dim", "tile_rows_target", "out_dtype"))
def image_encoder(x, w1, b1, w2, b2, *, embed_dim,
                  tile_rows_target=DEFAULT_TILE_ROWS, out_dtype=jnp.float32):
    """x: (B, 3, H, W) NCHW like PyTorch.  Returns (B, Hp*Wp, embed_dim)."""
    B, C, H, W = x.shape
    assert C == CHANNELS and H % PATCH == 0 and W % PATCH == 0
    Hp, Wp = H // PATCH, W // PATCH
    N = B * Hp * Wp
    E_pad = _round_up(embed_dim, LANE)
    out_dtype = jax.dtypes.canonicalize_dtype(out_dtype)

    tile_rows, grid_len, pad_rows, vmem_limit = _plan_tiles(
        N, E_pad, tile_rows_target, out_dtype.itemsize)
    n_rows_out = grid_len * tile_rows              # output rows: never OOB on store

    # Patch extraction glue (bf16).  With allow_input_fusion this producer fuses
    # into the kernel's input pipeline; otherwise it is one bf16 round trip.
    xb = x if x.dtype == jnp.bfloat16 else x.astype(jnp.bfloat16)
    patches = xb.reshape(B, C, Hp, PATCH, Wp, PATCH)
    patches = patches.transpose(0, 2, 4, 1, 3, 5)          # (B, Hp, Wp, C, kh, kw)
    patches = patches.reshape(N, K)
    if pad_rows:
        patches = jnp.pad(patches, ((0, pad_rows), (0, 0)))

    # Parameters, zero-padded to lane-dense widths (numerically exact).
    w1_mat = jnp.pad(w1.reshape(HIDDEN, K).T.astype(jnp.float32),
                     ((0, 0), (0, HIDDEN_PAD - HIDDEN))).astype(jnp.bfloat16)
    b1_row = jnp.pad(b1.reshape(1, HIDDEN).astype(jnp.float32),
                     ((0, 0), (0, HIDDEN_PAD - HIDDEN)))
    w2_mat = jnp.pad(w2.reshape(embed_dim, HIDDEN).T.astype(jnp.float32),
                     ((0, HIDDEN_PAD - HIDDEN), (0, E_pad - embed_dim))
                     ).astype(jnp.bfloat16)
    b2_row = jnp.pad(b2.reshape(1, embed_dim).astype(jnp.float32),
                     ((0, 0), (0, E_pad - embed_dim)))

    out = pl.pallas_call(
        _encoder_kernel,
        out_shape=jax.ShapeDtypeStruct((n_rows_out, E_pad), out_dtype),
        grid_spec=pltpu.PrefetchScalarGridSpec(
            num_scalar_prefetch=0,
            grid=(grid_len,),
            in_specs=[
                # Tunable: pipeline_mode=pl.Buffered(3) on this spec if the input
                # stream is still exposed after tiling (revert if VMEM-bound on v7x).
                pl.BlockSpec((tile_rows, K), lambda i: (i, 0)),
                pl.BlockSpec((K, HIDDEN_PAD), lambda i: (0, 0)),
                pl.BlockSpec((1, HIDDEN_PAD), lambda i: (0, 0)),
                pl.BlockSpec((HIDDEN_PAD, E_pad), lambda i: (0, 0)),
                pl.BlockSpec((1, E_pad), lambda i: (0, 0)),
            ],
            out_specs=pl.BlockSpec((tile_rows, E_pad), lambda i: (i, 0)),
        ),
        compiler_params=pltpu.CompilerParams(
            dimension_semantics=("parallel",),
            allow_input_fusion=[True, False, False, False, False],
            vmem_limit_bytes=vmem_limit),
    )(patches, w1_mat, b1_row, w2_mat, b2_row)

    # Strip row / lane padding (padded rows may hold garbage — never expose them),
    # restore (B, Hp*Wp, E) == flatten(2).transpose(1, 2).
    return out[:N, :embed_dim].reshape(B, Hp * Wp, embed_dim)


def _reference(x, w1, b1, w2, b2):
    """Pure-JAX f32 reference using real convolutions (matches PyTorch semantics)."""
    y = jax.lax.conv_general_dilated(
        x, w1, window_strides=(PATCH, PATCH), padding="VALID",
        dimension_numbers=("NCHW", "OIHW", "NCHW"))
    y = y + b1.reshape(1, -1, 1, 1)
    y = jnp.maximum(y, 0.0)
    y = jax.lax.conv_general_dilated(
        y, w2, window_strides=(1, 1), padding="VALID",
        dimension_numbers=("NCHW", "OIHW", "NCHW"))
    y = y + b2.reshape(1, -1, 1, 1)
    B, E = y.shape[0], y.shape[1]
    return y.reshape(B, E, -1).transpose(0, 2, 1)


if __name__ == "__main__":
    embed_dim = 32
    B, C, H, W = 3, 3, 48, 48        # N = 27 patches: exercises ragged / padded paths

    key = jax.random.PRNGKey(0)
    kx, k1, kb1, k2, kb2 = jax.random.split(key, 5)

    x = jax.random.normal(kx, (B, C, H, W), dtype=jnp.float32)
    # Deterministic synthetic parameters (shapes per nn.Conv2d in __init__).
    w1 = jax.random.normal(k1, (HIDDEN, C, PATCH, PATCH), dtype=jnp.float32) * 0.05
    b1 = jax.random.normal(kb1, (HIDDEN,), dtype=jnp.float32) * 0.05
    w2 = jax.random.normal(k2, (embed_dim, HIDDEN, 1, 1), dtype=jnp.float32) * 0.05
    b2 = jax.random.normal(kb2, (embed_dim,), dtype=jnp.float32) * 0.05

    ref = _reference(x, w1, b1, w2, b2)

    # Default path: single tile, f32 output (PyTorch parity).
    out = jax.block_until_ready(image_encoder(x, w1, b1, w2, b2, embed_dim=embed_dim))
    assert out.shape == (B, (H // PATCH) * (W // PATCH), embed_dim), out.shape
    # bf16 inputs/weights with f32 accumulation -> loose tolerance vs f32 reference.
    assert jnp.allclose(out, ref, atol=5e-2, rtol=5e-2), \
        float(jnp.max(jnp.abs(out - ref)))

    # Tiny tile target: grid > 1 (even) with a ragged, un-padded last tile.
    out2 = jax.block_until_ready(
        image_encoder(x, w1, b1, w2, b2, embed_dim=embed_dim, tile_rows_target=16))
    assert jnp.allclose(out2, ref, atol=5e-2, rtol=5e-2), \
        float(jnp.max(jnp.abs(out2 - ref)))

    # bf16 output path (downstream transformer blocks typically consume bf16).
    out3 = jax.block_until_ready(
        image_encoder(x, w1, b1, w2, b2, embed_dim=embed_dim,
                      out_dtype=jnp.bfloat16))
    assert out3.dtype == jnp.bfloat16
    assert jnp.allclose(out3.astype(jnp.float32), ref, atol=1e-1, rtol=1e-1), \
        float(jnp.max(jnp.abs(out3.astype(jnp.float32) - ref)))

    print("KERNEL_OK")
</pallas_src>

<mosaic_0001>
module attributes {stable_mosaic.version = 11 : i64} {
  func.func @_encoder_kernel(%arg0: i32, %arg1: memref<32x768xbf16, #tpu.memory_space<vmem>>, %arg2: memref<768x128xbf16, #tpu.memory_space<vmem>>, %arg3: memref<1x128xf32, #tpu.memory_space<vmem>>, %arg4: memref<128x128xbf16, #tpu.memory_space<vmem>>, %arg5: memref<1x128xf32, #tpu.memory_space<vmem>>, %arg6: memref<32x128xf32, #tpu.memory_space<vmem>>) attributes {dimension_semantics = [#tpu.dimension_semantics<parallel>], iteration_bounds = array<i64: 1>, scalar_prefetch = 0 : i64, scratch_operands = 0 : i64, tpu.core_type = #tpu.core_type<tc>, window_params = [{transform_indices = @transform_0, window_bounds = array<i64: 32, 768>}, {pipeline_mode = #tpu.pipeline_mode<synchronous>, transform_indices = @transform_1, window_bounds = array<i64: 768, 128>}, {pipeline_mode = #tpu.pipeline_mode<synchronous>, transform_indices = @transform_2, window_bounds = array<i64: 1, 128>}, {pipeline_mode = #tpu.pipeline_mode<synchronous>, transform_indices = @transform_3, window_bounds = array<i64: 128, 128>}, {pipeline_mode = #tpu.pipeline_mode<synchronous>, transform_indices = @transform_4, window_bounds = array<i64: 1, 128>}, {transform_indices = @transform_5, window_bounds = array<i64: 32, 128>}]} {
    %c0 = arith.constant 0 : index
    %c0_0 = arith.constant 0 : index
    %0 = vector.load %arg1[%c0, %c0_0] : memref<32x768xbf16, #tpu.memory_space<vmem>>, vector<32x768xbf16>
    %c0_1 = arith.constant 0 : index
    %c0_2 = arith.constant 0 : index
    %1 = vector.load %arg2[%c0_1, %c0_2] : memref<768x128xbf16, #tpu.memory_space<vmem>>, vector<768x128xbf16>
    %cst = arith.constant dense<0.000000e+00> : vector<32x128xf32>
    %2 = tpu.matmul %0, %1, %cst {dimension_numbers = #tpu.dot_dimension_numbers<[1], [0], [0], [1], [0, 0, 1, 1], [], []>} : vector<32x768xbf16>, vector<768x128xbf16>, vector<32x128xf32> -> vector<32x128xf32>
    %c0_3 = arith.constant 0 : index
    %c0_4 = arith.constant 0 : index
    %3 = vector.load %arg3[%c0_3, %c0_4] : memref<1x128xf32, #tpu.memory_space<vmem>>, vector<1x128xf32>
    %4 = vector.broadcast %3 : vector<1x128xf32> to vector<32x128xf32>
    %5 = arith.addf %2, %4 : vector<32x128xf32>
    %cst_5 = arith.constant 0.000000e+00 : f32
    %6 = vector.broadcast %cst_5 : f32 to vector<32x128xf32>
    %7 = arith.maximumf %5, %6 : vector<32x128xf32>
    %8 = arith.truncf %7 : vector<32x128xf32> to vector<32x128xbf16>
    %c0_6 = arith.constant 0 : index
    %c0_7 = arith.constant 0 : index
    %9 = vector.load %arg4[%c0_6, %c0_7] : memref<128x128xbf16, #tpu.memory_space<vmem>>, vector<128x128xbf16>
    %cst_8 = arith.constant dense<0.000000e+00> : vector<32x128xf32>
    %10 = tpu.matmul %8, %9, %cst_8 {dimension_numbers = #tpu.dot_dimension_numbers<[1], [0], [0], [1], [0, 0, 1, 1], [], []>} : vector<32x128xbf16>, vector<128x128xbf16>, vector<32x128xf32> -> vector<32x128xf32>
    %c0_9 = arith.constant 0 : index
    %c0_10 = arith.constant 0 : index
    %11 = vector.load %arg5[%c0_9, %c0_10] : memref<1x128xf32, #tpu.memory_space<vmem>>, vector<1x128xf32>
    %12 = vector.broadcast %11 : vector<1x128xf32> to vector<32x128xf32>
    %13 = arith.addf %10, %12 : vector<32x128xf32>
    %c0_11 = arith.constant 0 : index
    %c0_12 = arith.constant 0 : index
    %14 = vector.load %arg6[%c0_11, %c0_12] : memref<32x128xf32, #tpu.memory_space<vmem>>, vector<32x128xf32>
    tpu.vector_store %arg6[%c0_11, %c0_12], %13 {strides = array<i32>} : memref<32x128xf32, #tpu.memory_space<vmem>>, vector<32x128xf32>,
    return
  }
  func.func @transform_0(%arg0: i32) -> (i32, i32) {
    %c0_i32 = arith.constant 0 : i32
    %c0_i32_0 = arith.constant 0 : i32
    return %arg0, %c0_i32 : i32, i32
  }
  func.func @transform_1(%arg0: i32) -> (i32, i32) {
    %c0_i32 = arith.constant 0 : i32
    %c0_i32_0 = arith.constant 0 : i32
    %c0_i32_1 = arith.constant 0 : i32
    return %c0_i32, %c0_i32_0 : i32, i32
  }
  func.func @transform_2(%arg0: i32) -> (i32, i32) {
    %c0_i32 = arith.constant 0 : i32
    %c0_i32_0 = arith.constant 0 : i32
    %c0_i32_1 = arith.constant 0 : i32
    return %c0_i32, %c0_i32_0 : i32, i32
  }
  func.func @transform_3(%arg0: i32) -> (i32, i32) {
    %c0_i32 = arith.constant 0 : i32
    %c0_i32_0 = arith.constant 0 : i32
    %c0_i32_1 = arith.constant 0 : i32
    return %c0_i32, %c0_i32_0 : i32, i32
  }
  func.func @transform_4(%arg0: i32) -> (i32, i32) {
    %c0_i32 = arith.constant 0 : i32
    %c0_i32_0 = arith.constant 0 : i32
    %c0_i32_1 = arith.constant 0 : i32
    return %c0_i32, %c0_i32_0 : i32, i32
  }
  func.func @transform_5(%arg0: i32) -> (i32, i32) {
    %c0_i32 = arith.constant 0 : i32
    %c0_i32_0 = arith.constant 0 : i32
    return %arg0, %c0_i32 : i32, i32
  }
}

</mosaic_0001>

<llo_original>
// kernel: image_encoder.2
$region0: #{image_encoder.2}
  #allocation0 [shape = 'u32[]', space=smem, size = 0x4, offset = 0x4, fixed_abs, tag = 'smem constant byte address 0x4 - core index']
  #allocation1 [shape = 'u32[144,128]{1,0:T(1,128)}', space=vmem, size = 0x12000, scoped, tag = 'internal scratch']
  #allocation2 [shape = 'u32[2048]{0}', space=vmem, size = 0x2000, scoped, tag = 'scoped memory for image_encoder.2']
  #allocation3 [shape = 'u32[2048]{0}', space=vmem, size = 0x2000, scoped, tag = 'scoped memory for image_encoder.2']
  #allocation4 [shape = 'u32[2048]{0}', space=vmem, size = 0x2000, scoped, tag = 'scoped memory for image_encoder.2']
  #allocation5 [shape = 'u32[2048]{0}', space=vmem, size = 0x2000, scoped, tag = 'scoped memory for image_encoder.2']
  #allocation6 [shape = 'u32[2048]{0}', space=vmem, size = 0x2000, scoped, tag = 'scoped memory for image_encoder.2']
  %s0 = inlined_call_operand.vmem [shape: bf16[768,128], index: 0, kind: input, shape index: {}]
  %s1 = inlined_call_operand.vmem [shape: f32[1,128], index: 1, kind: input, shape index: {}]
  %s2 = inlined_call_operand.vmem [shape: bf16[128,128], index: 2, kind: input, shape index: {}]
  %s3 = inlined_call_operand.vmem [shape: f32[1,128], index: 3, kind: input, shape index: {}]
  %s4 = inlined_call_operand.vmem [shape: bf16[27,768], index: 4, kind: input, shape index: {}]
  %s5 = inlined_call_operand.<no memory space> [shape: bf16[], index: 5, kind: input, shape index: {}]
  %s6 = inlined_call_operand.vmem [shape: f32[32,128], index: 6, kind: output, shape index: {}]
  %s7 = sld [smem:[#allocation0]]
  $region30: #{image_encoder.2} parent=0
    _
  %s9 = ssub.s32 1, %s7
  %s10 = scalar_select 0, %s9, %s7
  %v11 = vstv %s5
  %v12 = vunpack.i.l.bf16 %v11
  %v14 = vunpack.i.h.bf16 %v11
  $region1: #{image_encoder.2} parent=0
    #allocation7 [shape = 'u8[49152]{0}', space=vmem, size = 0xc000, dematerialized = true, scoped, tag = 'FusionAdapter Buffer %fusion.1 = bf16[32,768]{1,0:T(8,128)(2,1)} fusion(%param_4.1, %param_5), kind=kLoop, calls=%fused_computation.1.clone, metadata={op_name="jit(image_encoder)/jit(_pad)/pad" stack_frame_id=11}']
    // Predicated region
    $region2: #{image_encoder.2} parent=1 // pred_check
      _
    $region3: #{image_encoder.2} parent=1 // pred_check_branch
      %17 = sbr.rel (0) target = $region5
    $region4: #{image_encoder.2} parent=1 // pred_region
      _
    $region5: #{image_encoder.2} parent=1 // pred_fallthru
      _
    // Predicated region
    $region6: #{image_encoder.2} parent=1 // pred_check
      _
    $region7: #{image_encoder.2} parent=1 // pred_check_branch
      %19 = sbr.rel (0) target = $region9
    $region8: #{image_encoder.2} parent=1 // pred_region
      _
    $region9: #{image_encoder.2} parent=1 // pred_fallthru
      _
    // Predicated region
    $region10: #{image_encoder.2} parent=1 // pred_check
      _
    $region11: #{image_encoder.2} parent=1 // pred_check_branch
      %21 = sbr.rel (0) target = $region13
    $region12: #{image_encoder.2} parent=1 // pred_region
      _
    $region13: #{image_encoder.2} parent=1 // pred_fallthru
      _
    // Predicated region
    $region14: #{image_encoder.2} parent=1 // pred_check
      _
    $region15: #{image_encoder.2} parent=1 // pred_check_branch
      %23 = sbr.rel (0) target = $region17
    $region16: #{image_encoder.2} parent=1 // pred_region
      _
    $region17: #{image_encoder.2} parent=1 // pred_fallthru
      _
    // Predicated region
    $region18: #{image_encoder.2} parent=1 // pred_check
      _
    $region19: #{image_encoder.2} parent=1 // pred_check_branch
      %25 = sbr.rel (0) target = $region21
    $region20: #{image_encoder.2} parent=1 // pred_region
      _
    $region21: #{image_encoder.2} parent=1 // pred_fallthru
      _
    %v26 = vld [vmem:[%s4] sm:$0xf]
    %v27 = vunpack.c.l.bf16 %v26
    %v28 = vunpack.c.h.bf16 %v26
    %v29 = vlaneseq
    %v30 = vshrl.u32 %v29, 7
    %vm32 = vcmp.lt.s32.totalorder %v30, 27
    %v33 = vsel %vm32, %v27, %v12
    %v34 = vpack.c.bf16 0.0, %v33
    %s36 = ssub.s32 16, 1
    %37 = vst [vmem:[#allocation7] sm:%s36] %v34
    %s38 = scalar_lea.vmem %s4, 4
    %v39 = vld [vmem:[%s38] sm:$0xf]
    %v40 = vunpack.c.l.bf16 %v39
    %v41 = vunpack.c.h.bf16 %v39
    %v42 = vlaneseq
    %v43 = vshrl.u32 %v42, 7
    %vm45 = vcmp.lt.s32.totalorder %v43, 27
    %v46 = vsel %vm45, %v40, %v12
    %s47 = scalar_lea.vmem [#allocation7], 4
    %v48 = vpack.c.bf16 0.0, %v46
    %s50 = ssub.s32 16, 1
    %51 = vst [vmem:[%s47] sm:%s50] %v48
    %s52 = scalar_lea.vmem %s4, 8
    %v53 = vld [vmem:[%s52] sm:$0xf]
    %v54 = vunpack.c.l.bf16 %v53
    %v55 = vunpack.c.h.bf16 %v53
    %v56 = vlaneseq
    %v57 = vshrl.u32 %v56, 7
    %vm59 = vcmp.lt.s32.totalorder %v57, 27
    %v60 = vsel %vm59, %v54, %v12
    %s61 = scalar_lea.vmem [#allocation7], 8
    %v62 = vpack.c.bf16 0.0, %v60
    %s64 = ssub.s32 16, 1
    %65 = vst [vmem:[%s61] sm:%s64] %v62
    %s66 = scalar_lea.vmem %s4, 12
    %v67 = vld [vmem:[%s66] sm:$0xf]
    %v68 = vunpack.c.l.bf16 %v67
    %v69 = vunpack.c.h.bf16 %v67
    %v70 = vlaneseq
    %v71 = vshrl.u32 %v70, 7
    %vm73 = vcmp.lt.s32.totalorder %v71, 27
    %v74 = vsel %vm73, %v68, %v12
    %s75 = scalar_lea.vmem [#allocation7], 12
    %v76 = vpack.c.bf16 0.0, %v74
    %s78 = ssub.s32 16, 1
    %79 = vst [vmem:[%s75] sm:%s78] %v76
    %s80 = scalar_lea.vmem %s4, 16
    %v81 = vld [vmem:[%s80] sm:$0xf]
    %v82 = vunpack.c.l.bf16 %v81
    %v83 = vunpack.c.h.bf16 %v81
    %v84 = vlaneseq
    %v85 = vshrl.u32 %v84, 7
    %vm87 = vcmp.lt.s32.totalorder %v85, 27
    %v88 = vsel %vm87, %v82, %v12
    %s89 = scalar_lea.vmem [#allocation7], 16
    %v90 = vpack.c.bf16 0.0, %v88
    %s92 = ssub.s32 16, 1
    %93 = vst [vmem:[%s89] sm:%s92] %v90
    %s94 = scalar_lea.vmem %s4, 20
    %v95 = vld [vmem:[%s94] sm:$0xf]
    %v96 = vunpack.c.l.bf16 %v95
    %v97 = vunpack.c.h.bf16 %v95
    %v98 = vlaneseq
    %v99 = vshrl.u32 %v98, 7
    %vm101 = vcmp.lt.s32.totalorder %v99, 27
    %v102 = vsel %vm101, %v96, %v12
    %s103 = scalar_lea.vmem [#allocation7], 20
    %v104 = vpack.c.bf16 0.0, %v102
    %s106 = ssub.s32 16, 1
    %107 = vst [vmem:[%s103] sm:%s106] %v104
    %s108 = scalar_lea.vmem %s4, 24
    %v109 = vld [vmem:[%s108] sm:$0xf]
    %v110 = vunpack.c.l.bf16 %v109
    %v111 = vunpack.c.h.bf16 %v109
    %v112 = vlaneseq
    %v113 = vshrl.u32 %v112, 7
    %v114 = vadd.s32 %v113, 8
    %vm115 = vcmp.lt.s32.totalorder %v114, 27
    %v116 = vsel %vm115, %v110, %v12
    %s117 = scalar_lea.vmem [#allocation7], 24
    %v118 = vpack.c.bf16 0.0, %v116
    %s120 = ssub.s32 16, 1
    %121 = vst [vmem:[%s117] sm:%s120] %v118
    %s122 = scalar_lea.vmem %s4, 28
    %v123 = vld [vmem:[%s122] sm:$0xf]
    %v124 = vunpack.c.l.bf16 %v123
    %v125 = vunpack.c.h.bf16 %v123
    %v126 = vlaneseq
    %v127 = vshrl.u32 %v126, 7
    %v128 = vadd.s32 %v127, 8
    %vm129 = vcmp.lt.s32.totalorder %v128, 27
    %v130 = vsel %vm129, %v124, %v12
    %s131 = scalar_lea.vmem [#allocation7], 28
    %v132 = vpack.c.bf16 0.0, %v130
    %s134 = ssub.s32 16, 1
    %135 = vst [vmem:[%s131] sm:%s134] %v132
    %s136 = scalar_lea.vmem %s4, 32
    %v137 = vld [vmem:[%s136] sm:$0xf]
    %v138 = vunpack.c.l.bf16 %v137
    %v139 = vunpack.c.h.bf16 %v137
    %v140 = vlaneseq
    %v141 = vshrl.u32 %v140, 7
    %v142 = vadd.s32 %v141, 8
    %vm143 = vcmp.lt.s32.totalorder %v142, 27
    %v144 = vsel %vm143, %v138, %v12
    %s145 = scalar_lea.vmem [#allocation7], 32
    %v146 = vpack.c.bf16 0.0, %v144
    %s148 = ssub.s32 16, 1
    %149 = vst [vmem:[%s145] sm:%s148] %v146
    %s150 = scalar_lea.vmem %s4, 36
    %v151 = vld [vmem:[%s150] sm:$0xf]
    %v152 = vunpack.c.l.bf16 %v151
    %v153 = vunpack.c.h.bf16 %v151
    %v154 = vlaneseq
    %v155 = vshrl.u32 %v154, 7
    %v156 = vadd.s32 %v155, 8
    %vm157 = vcmp.lt.s32.totalorder %v156, 27
    %v158 = vsel %vm157, %v152, %v12
    %s159 = scalar_lea.vmem [#allocation7], 36
    %v160 = vpack.c.bf16 0.0, %v158
    %s162 = ssub.s32 16, 1
    %163 = vst [vmem:[%s159] sm:%s162] %v160
    %s164 = scalar_lea.vmem %s4, 40
    %v165 = vld [vmem:[%s164] sm:$0xf]
    %v166 = vunpack.c.l.bf16 %v165
    %v167 = vunpack.c.h.bf16 %v165
    %v168 = vlaneseq
    %v169 = vshrl.u32 %v168, 7
    %v170 = vadd.s32 %v169, 8
    %vm171 = vcmp.lt.s32.totalorder %v170, 27
    %v172 = vsel %vm171, %v166, %v12
    %s173 = scalar_lea.vmem [#allocation7], 40
    %v174 = vpack.c.bf16 0.0, %v172
    %s176 = ssub.s32 16, 1
    %177 = vst [vmem:[%s173] sm:%s176] %v174
    %s178 = scalar_lea.vmem %s4, 44
    %v179 = vld [vmem:[%s178] sm:$0xf]
    %v180 = vunpack.c.l.bf16 %v179
    %v181 = vunpack.c.h.bf16 %v179
    %v182 = vlaneseq
    %v183 = vshrl.u32 %v182, 7
    %v184 = vadd.s32 %v183, 8
    %vm185 = vcmp.lt.s32.totalorder %v184, 27
    %v186 = vsel %vm185, %v180, %v12
    %s187 = scalar_lea.vmem [#allocation7], 44
    %v188 = vpack.c.bf16 0.0, %v186
    %s190 = ssub.s32 16, 1
    %191 = vst [vmem:[%s187] sm:%s190] %v188
    %s192 = scalar_lea.vmem %s4, 48
    %v193 = vld [vmem:[%s192] sm:$0xf]
    %v194 = vunpack.c.l.bf16 %v193
    %v195 = vunpack.c.h.bf16 %v193
    %v196 = vlaneseq
    %v197 = vshrl.u32 %v196, 7
    %v198 = vadd.s32 %v197, 16
    %vm199 = vcmp.lt.s32.totalorder %v198, 27
    %v200 = vsel %vm199, %v194, %v12
    %s201 = scalar_lea.vmem [#allocation7], 48
    %v202 = vpack.c.bf16 0.0, %v200
    %s204 = ssub.s32 16, 1
    %205 = vst [vmem:[%s201] sm:%s204] %v202
    %s206 = scalar_lea.vmem %s4, 52
    %v207 = vld [vmem:[%s206] sm:$0xf]
    %v208 = vunpack.c.l.bf16 %v207
    %v209 = vunpack.c.h.bf16 %v207
    %v210 = vlaneseq
    %v211 = vshrl.u32 %v210, 7
    %v212 = vadd.s32 %v211, 16
    %vm213 = vcmp.lt.s32.totalorder %v212, 27
    %v214 = vsel %vm213, %v208, %v12
    %s215 = scalar_lea.vmem [#allocation7], 52
    %v216 = vpack.c.bf16 0.0, %v214
    %s218 = ssub.s32 16, 1
    %219 = vst [vmem:[%s215] sm:%s218] %v216
    %s220 = scalar_lea.vmem %s4, 56
    %v221 = vld [vmem:[%s220] sm:$0xf]
    %v222 = vunpack.c.l.bf16 %v221
    %v223 = vunpack.c.h.bf16 %v221
    %v224 = vlaneseq
    %v225 = vshrl.u32 %v224, 7
    %v226 = vadd.s32 %v225, 16
    %vm227 = vcmp.lt.s32.totalorder %v226, 27
    %v228 = vsel %vm227, %v222, %v12
    %s229 = scalar_lea.vmem [#allocation7], 56
    %v230 = vpack.c.bf16 0.0, %v228
    %s232 = ssub.s32 16, 1
    %233 = vst [vmem:[%s229] sm:%s232] %v230
    %s234 = scalar_lea.vmem %s4, 60
    %v235 = vld [vmem:[%s234] sm:$0xf]
    %v236 = vunpack.c.l.bf16 %v235
    %v237 = vunpack.c.h.bf16 %v235
    %v238 = vlaneseq
    %v239 = vshrl.u32 %v238, 7
    %v240 = vadd.s32 %v239, 16
    %vm241 = vcmp.lt.s32.totalorder %v240, 27
    %v242 = vsel %vm241, %v236, %v12
    %s243 = scalar_lea.vmem [#allocation7], 60
    %v244 = vpack.c.bf16 0.0, %v242
    %s246 = ssub.s32 16, 1
    %247 = vst [vmem:[%s243] sm:%s246] %v244
    %s248 = scalar_lea.vmem %s4, 64
    %v249 = vld [vmem:[%s248] sm:$0xf]
    %v250 = vunpack.c.l.bf16 %v249
    %v251 = vunpack.c.h.bf16 %v249
    %v252 = vlaneseq
    %v253 = vshrl.u32 %v252, 7
    %v254 = vadd.s32 %v253, 16
    %vm255 = vcmp.lt.s32.totalorder %v254, 27
    %v256 = vsel %vm255, %v250, %v12
    %s257 = scalar_lea.vmem [#allocation7], 64
    %v258 = vpack.c.bf16 0.0, %v256
    %s260 = ssub.s32 16, 1
    %261 = vst [vmem:[%s257] sm:%s260] %v258
    %s262 = scalar_lea.vmem %s4, 68
    %v263 = vld [vmem:[%s262] sm:$0xf]
    %v264 = vunpack.c.l.bf16 %v263
    %v265 = vunpack.c.h.bf16 %v263
    %v266 = vlaneseq
    %v267 = vshrl.u32 %v266, 7
    %v268 = vadd.s32 %v267, 16
    %vm269 = vcmp.lt.s32.totalorder %v268, 27
    %v270 = vsel %vm269, %v264, %v12
    %s271 = scalar_lea.vmem [#allocation7], 68
    %v272 = vpack.c.bf16 0.0, %v270
    %s274 = ssub.s32 16, 1
    %275 = vst [vmem:[%s271] sm:%s274] %v272
    %s276 = scalar_lea.vmem %s4, 72
    %s278 = sor.u32 255, 127
    %s279 = sand.u32 %s278, 85
    %s280 = sshrl.u32 %s279, 1
    %s281 = sor.u32 %s279, %s280
    %s282 = sand.u32 51, %s281
    %s283 = sshrl.u32 %s282, 2
    %s284 = sor.u32 %s282, %s283
    %s285 = sand.u32 15, %s284
    %v286 = vld [vmem:[%s276] sm:%s285]
    %v287 = vunpack.c.l.bf16 %v286
    %v288 = vunpack.c.h.bf16 %v286
    %v289 = vlaneseq
    %v290 = vshrl.u32 %v289, 7
    %v291 = vadd.s32 %v290, 24
    %vm292 = vcmp.lt.s32.totalorder %v291, 27
    %v293 = vsel %vm292, %v287, %v12
    %s294 = scalar_lea.vmem [#allocation7], 72
    %v295 = vpack.c.bf16 0.0, %v293
    %s297 = ssub.s32 16, 1
    %298 = vst [vmem:[%s294] sm:%s297] %v295
    %s299 = scalar_lea.vmem %s4, 76
    %s301 = sor.u32 255, 127
    %s302 = sand.u32 %s301, 85
    %s303 = sshrl.u32 %s302, 1
    %s304 = sor.u32 %s302, %s303
    %s305 = sand.u32 51, %s304
    %s306 = sshrl.u32 %s305, 2
    %s307 = sor.u32 %s305, %s306
    %s308 = sand.u32 15, %s307
    %v309 = vld [vmem:[%s299] sm:%s308]
    %v310 = vunpack.c.l.bf16 %v309
    %v311 = vunpack.c.h.bf16 %v309
    %v312 = vlaneseq
    %v313 = vshrl.u32 %v312, 7
    %v314 = vadd.s32 %v313, 24
    %vm315 = vcmp.lt.s32.totalorder %v314, 27
    %v316 = vsel %vm315, %v310, %v12
    %s317 = scalar_lea.vmem [#allocation7], 76
    %v318 = vpack.c.bf16 0.0, %v316
    %s320 = ssub.s32 16, 1
    %321 = vst [vmem:[%s317] sm:%s320] %v318
    %s322 = scalar_lea.vmem %s4, 80
    %s324 = sor.u32 255, 127
    %s325 = sand.u32 %s324, 85
    %s326 = sshrl.u32 %s325, 1
    %s327 = sor.u32 %s325, %s326
    %s328 = sand.u32 51, %s327
    %s329 = sshrl.u32 %s328, 2
    %s330 = sor.u32 %s328, %s329
    %s331 = sand.u32 15, %s330
    %v332 = vld [vmem:[%s322] sm:%s331]
    %v333 = vunpack.c.l.bf16 %v332
    %v334 = vunpack.c.h.bf16 %v332
    %v335 = vlaneseq
    %v336 = vshrl.u32 %v335, 7
    %v337 = vadd.s32 %v336, 24
    %vm338 = vcmp.lt.s32.totalorder %v337, 27
    %v339 = vsel %vm338, %v333, %v12
    %s340 = scalar_lea.vmem [#allocation7], 80
    %v341 = vpack.c.bf16 0.0, %v339
    %s343 = ssub.s32 16, 1
    %344 = vst [vmem:[%s340] sm:%s343] %v341
    %s345 = scalar_lea.vmem %s4, 84
    %s347 = sor.u32 255, 127
    %s348 = sand.u32 %s347, 85
    %s349 = sshrl.u32 %s348, 1
    %s350 = sor.u32 %s348, %s349
    %s351 = sand.u32 51, %s350
    %s352 = sshrl.u32 %s351, 2
    %s353 = sor.u32 %s351, %s352
    %s354 = sand.u32 15, %s353
    %v355 = vld [vmem:[%s345] sm:%s354]
    %v356 = vunpack.c.l.bf16 %v355
    %v357 = vunpack.c.h.bf16 %v355
    %v358 = vlaneseq
    %v359 = vshrl.u32 %v358, 7
    %v360 = vadd.s32 %v359, 24
    %vm361 = vcmp.lt.s32.totalorder %v360, 27
    %v362 = vsel %vm361, %v356, %v12
    %s363 = scalar_lea.vmem [#allocation7], 84
    %v364 = vpack.c.bf16 0.0, %v362
    %s366 = ssub.s32 16, 1
    %367 = vst [vmem:[%s363] sm:%s366] %v364
    %s368 = scalar_lea.vmem %s4, 88
    %s370 = sor.u32 255, 127
    %s371 = sand.u32 %s370, 85
    %s372 = sshrl.u32 %s371, 1
    %s373 = sor.u32 %s371, %s372
    %s374 = sand.u32 51, %s373
    %s375 = sshrl.u32 %s374, 2
    %s376 = sor.u32 %s374, %s375
    %s377 = sand.u32 15, %s376
    %v378 = vld [vmem:[%s368] sm:%s377]
    %v379 = vunpack.c.l.bf16 %v378
    %v380 = vunpack.c.h.bf16 %v378
    %v381 = vlaneseq
    %v382 = vshrl.u32 %v381, 7
    %v383 = vadd.s32 %v382, 24
    %vm384 = vcmp.lt.s32.totalorder %v383, 27
    %v385 = vsel %vm384, %v379, %v12
    %s386 = scalar_lea.vmem [#allocation7], 88
    %v387 = vpack.c.bf16 0.0, %v385
    %s389 = ssub.s32 16, 1
    %390 = vst [vmem:[%s386] sm:%s389] %v387
    %s391 = scalar_lea.vmem %s4, 92
    %s393 = sor.u32 255, 127
    %s394 = sand.u32 %s393, 85
    %s395 = sshrl.u32 %s394, 1
    %s396 = sor.u32 %s394, %s395
    %s397 = sand.u32 51, %s396
    %s398 = sshrl.u32 %s397, 2
    %s399 = sor.u32 %s397, %s398
    %s400 = sand.u32 15, %s399
    %v401 = vld [vmem:[%s391] sm:%s400]
    %v402 = vunpack.c.l.bf16 %v401
    %v403 = vunpack.c.h.bf16 %v401
    %v404 = vlaneseq
    %v405 = vshrl.u32 %v404, 7
    %v406 = vadd.s32 %v405, 24
    %vm407 = vcmp.lt.s32.totalorder %v406, 27
    %v408 = vsel %vm407, %v402, %v12
    %s409 = scalar_lea.vmem [#allocation7], 92
    %v410 = vpack.c.bf16 0.0, %v408
    %s412 = ssub.s32 16, 1
    %413 = vst [vmem:[%s409] sm:%s412] %v410
    %v415 = vld [vmem:[#allocation7] sm:$0xff]
    %v416 = vld [vmem:[#allocation7 + $0x8] sm:$0xff]
    %v417 = vld [vmem:[#allocation7 + $0x10] sm:$0xff]
    %v418 = vld [vmem:[#allocation7 + $0x18] sm:$0xff]
    %v419 = vld [vmem:[#allocation7 + $0x20] sm:$0xff]
    %v420 = vld [vmem:[#allocation7 + $0x28] sm:$0xff]
    %v421 = vld [vmem:[#allocation7 + $0x30] sm:$0xff]
    %v422 = vld [vmem:[#allocation7 + $0x38] sm:$0xff]
    %v423 = vld [vmem:[#allocation7 + $0x40] sm:$0xff]
    %v424 = vld [vmem:[#allocation7 + $0x48] sm:$0xff]
    %v425 = vld [vmem:[#allocation7 + $0x50] sm:$0xff]
    %v426 = vld [vmem:[#allocation7 + $0x58] sm:$0xff]
    %v427 = vld [vmem:[%s0] sm:$0xf]
    %v428 = vld [vmem:[%s0 + $0x4] sm:$0xf]
    %v429 = vld [vmem:[%s0 + $0x8] sm:$0xf]
    %v430 = vld [vmem:[%s0 + $0xc] sm:$0xf]
    %v431 = vld [vmem:[%s0 + $0x10] sm:$0xf]
    %v432 = vld [vmem:[%s0 + $0x14] sm:$0xf]
    %v433 = vld [vmem:[%s0 + $0x18] sm:$0xf]
    %v434 = vld [vmem:[%s0 + $0x1c] sm:$0xf]
    %v435 = vld [vmem:[%s0 + $0x20] sm:$0xf]
    %v436 = vld [vmem:[%s0 + $0x24] sm:$0xf]
    %v437 = vld [vmem:[%s0 + $0x28] sm:$0xf]
    %v438 = vld [vmem:[%s0 + $0x2c] sm:$0xf]
    %v439 = vld [vmem:[%s0 + $0x30] sm:$0xf]
    %v440 = vld [vmem:[%s0 + $0x34] sm:$0xf]
    %v441 = vld [vmem:[%s0 + $0x38] sm:$0xf]
    %v442 = vld [vmem:[%s0 + $0x3c] sm:$0xf]
    %v443 = vld [vmem:[%s0 + $0x40] sm:$0xf]
    %v444 = vld [vmem:[%s0 + $0x44] sm:$0xf]
    %v445 = vld [vmem:[%s0 + $0x48] sm:$0xf]
    %v446 = vld [vmem:[%s0 + $0x4c] sm:$0xf]
    %v447 = vld [vmem:[%s0 + $0x50] sm:$0xf]
    %v448 = vld [vmem:[%s0 + $0x54] sm:$0xf]
    %v449 = vld [vmem:[%s0 + $0x58] sm:$0xf]
    %v450 = vld [vmem:[%s0 + $0x5c] sm:$0xf]
    %v451 = vld [vmem:[%s0 + $0x60] sm:$0xf]
    %v452 = vld [vmem:[%s0 + $0x64] sm:$0xf]
    %v453 = vld [vmem:[%s0 + $0x68] sm:$0xf]
    %v454 = vld [vmem:[%s0 + $0x6c] sm:$0xf]
    %v455 = vld [vmem:[%s0 + $0x70] sm:$0xf]
    %v456 = vld [vmem:[%s0 + $0x74] sm:$0xf]
    %v457 = vld [vmem:[%s0 + $0x78] sm:$0xf]
    %v458 = vld [vmem:[%s0 + $0x7c] sm:$0xf]
    %v459 = vld [vmem:[%s0 + $0x80] sm:$0xf]
    %v460 = vld [vmem:[%s0 + $0x84] sm:$0xf]
    %v461 = vld [vmem:[%s0 + $0x88] sm:$0xf]
    %v462 = vld [vmem:[%s0 + $0x8c] sm:$0xf]
    %v463 = vld [vmem:[%s0 + $0x90] sm:$0xf]
    %v464 = vld [vmem:[%s0 + $0x94] sm:$0xf]
    %v465 = vld [vmem:[%s0 + $0x98] sm:$0xf]
    %v466 = vld [vmem:[%s0 + $0x9c] sm:$0xf]
    %v467 = vld [vmem:[%s0 + $0xa0] sm:$0xf]
    %v468 = vld [vmem:[%s0 + $0xa4] sm:$0xf]
    %v469 = vld [vmem:[%s0 + $0xa8] sm:$0xf]
    %v470 = vld [vmem:[%s0 + $0xac] sm:$0xf]
    %v471 = vld [vmem:[%s0 + $0xb0] sm:$0xf]
    %v472 = vld [vmem:[%s0 + $0xb4] sm:$0xf]
    %v473 = vld [vmem:[%s0 + $0xb8] sm:$0xf]
    %v474 = vld [vmem:[%s0 + $0xbc] sm:$0xf]
    %v475 = vld [vmem:[%s0 + $0xc0] sm:$0xf]
    %v476 = vld [vmem:[%s0 + $0xc4] sm:$0xf]
    %v477 = vld [vmem:[%s0 + $0xc8] sm:$0xf]
    %v478 = vld [vmem:[%s0 + $0xcc] sm:$0xf]
    %v479 = vld [vmem:[%s0 + $0xd0] sm:$0xf]
    %v480 = vld [vmem:[%s0 + $0xd4] sm:$0xf]
    %v481 = vld [vmem:[%s0 + $0xd8] sm:$0xf]
    %v482 = vld [vmem:[%s0 + $0xdc] sm:$0xf]
    %v483 = vld [vmem:[%s0 + $0xe0] sm:$0xf]
    %v484 = vld [vmem:[%s0 + $0xe4] sm:$0xf]
    %v485 = vld [vmem:[%s0 + $0xe8] sm:$0xf]
    %v486 = vld [vmem:[%s0 + $0xec] sm:$0xf]
    %v487 = vld [vmem:[%s0 + $0xf0] sm:$0xf]
    %v488 = vld [vmem:[%s0 + $0xf4] sm:$0xf]
    %v489 = vld [vmem:[%s0 + $0xf8] sm:$0xf]
    %v490 = vld [vmem:[%s0 + $0xfc] sm:$0xf]
    %v491 = vld [vmem:[%s0 + $0x100] sm:$0xf]
    %v492 = vld [vmem:[%s0 + $0x104] sm:$0xf]
    %v493 = vld [vmem:[%s0 + $0x108] sm:$0xf]
    %v494 = vld [vmem:[%s0 + $0x10c] sm:$0xf]
    %v495 = vld [vmem:[%s0 + $0x110] sm:$0xf]
    %v496 = vld [vmem:[%s0 + $0x114] sm:$0xf]
    %v497 = vld [vmem:[%s0 + $0x118] sm:$0xf]
    %v498 = vld [vmem:[%s0 + $0x11c] sm:$0xf]
    %v499 = vld [vmem:[%s0 + $0x120] sm:$0xf]
    %v500 = vld [vmem:[%s0 + $0x124] sm:$0xf]
    %v501 = vld [vmem:[%s0 + $0x128] sm:$0xf]
    %v502 = vld [vmem:[%s0 + $0x12c] sm:$0xf]
    %v503 = vld [vmem:[%s0 + $0x130] sm:$0xf]
    %v504 = vld [vmem:[%s0 + $0x134] sm:$0xf]
    %v505 = vld [vmem:[%s0 + $0x138] sm:$0xf]
    %v506 = vld [vmem:[%s0 + $0x13c] sm:$0xf]
    %v507 = vld [vmem:[%s0 + $0x140] sm:$0xf]
    %v508 = vld [vmem:[%s0 + $0x144] sm:$0xf]
    %v509 = vld [vmem:[%s0 + $0x148] sm:$0xf]
    %v510 = vld [vmem:[%s0 + $0x14c] sm:$0xf]
    %v511 = vld [vmem:[%s0 + $0x150] sm:$0xf]
    %v512 = vld [vmem:[%s0 + $0x154] sm:$0xf]
    %v513 = vld [vmem:[%s0 + $0x158] sm:$0xf]
    %v514 = vld [vmem:[%s0 + $0x15c] sm:$0xf]
    %v515 = vld [vmem:[%s0 + $0x160] sm:$0xf]
    %v516 = vld [vmem:[%s0 + $0x164] sm:$0xf]
    %v517 = vld [vmem:[%s0 + $0x168] sm:$0xf]
    %v518 = vld [vmem:[%s0 + $0x16c] sm:$0xf]
    %v519 = vld [vmem:[%s0 + $0x170] sm:$0xf]
    %v520 = vld [vmem:[%s0 + $0x174] sm:$0xf]
    %v521 = vld [vmem:[%s0 + $0x178] sm:$0xf]
    %v522 = vld [vmem:[%s0 + $0x17c] sm:$0xf]
    %v523 = vld [vmem:[%s1] sm:$0x1]
    %v525 = vlaneseq
    %v526 = vshrl.u32 %v525, 7
    %v527 = vsub.s32 0, %v526
    %v528 = vrot.slane %v523, %v527
    %v542 = vunpack.c.l.b16 %v415
    %v543 = vunpack.c.h.b16 %v415
    %v544 = vunpack.c.l.b16 %v416
    %v545 = vunpack.c.h.b16 %v416
    %v546 = vunpack.c.l.b16 %v417
    %v547 = vunpack.c.h.b16 %v417
    %v548 = vunpack.c.l.b16 %v418
    %v549 = vunpack.c.h.b16 %v418
    %v550 = vunpack.c.l.b16 %v419
    %v551 = vunpack.c.h.b16 %v419
    %v552 = vunpack.c.l.b16 %v420
    %v553 = vunpack.c.h.b16 %v420
    %v554 = vunpack.c.l.b16 %v421
    %v555 = vunpack.c.h.b16 %v421
    %v556 = vunpack.c.l.b16 %v422
    %v557 = vunpack.c.h.b16 %v422
    %v558 = vunpack.c.l.b16 %v423
    %v559 = vunpack.c.h.b16 %v423
    %v560 = vunpack.c.l.b16 %v424
    %v561 = vunpack.c.h.b16 %v424
    %v562 = vunpack.c.l.b16 %v425
    %v563 = vunpack.c.h.b16 %v425
    %v564 = vunpack.c.l.b16 %v426
    %v565 = vunpack.c.h.b16 %v426
    %v566 = vpack.c.b16 %v548, %v542
    %v567 = vpack.c.b16 %v549, %v543
    %v568 = vpack.c.b16 %v550, %v544
    %v569 = vpack.c.b16 %v551, %v545
    %v570 = vpack.c.b16 %v552, %v546
    %v571 = vpack.c.b16 %v553, %v547
    %v572 = vpack.c.b16 %v560, %v554
    %v573 = vpack.c.b16 %v561, %v555
    %v574 = vpack.c.b16 %v562, %v556
    %v575 = vpack.c.b16 %v563, %v557
    %v576 = vpack.c.b16 %v564, %v558
    %v577 = vpack.c.b16 %v565, %v559
    %v686 = vunpack.c.l.b16 %v427
    %v687 = vunpack.c.l.b16 %v428
    %v688 = vunpack.c.l.b16 %v429
    %v689 = vunpack.c.l.b16 %v430
    %v690 = vunpack.c.l.b16 %v431
    %v691 = vunpack.c.l.b16 %v432
    %v692 = vunpack.c.l.b16 %v433
    %v693 = vunpack.c.l.b16 %v434
    %v694 = vunpack.c.l.b16 %v435
    %v695 = vunpack.c.l.b16 %v436
    %v696 = vunpack.c.l.b16 %v437
    %v697 = vunpack.c.l.b16 %v438
    %v698 = vunpack.c.l.b16 %v439
    %v699 = vunpack.c.l.b16 %v440
    %v700 = vunpack.c.l.b16 %v441
    %v701 = vunpack.c.l.b16 %v442
    %v702 = vunpack.c.l.b16 %v443
    %v703 = vunpack.c.l.b16 %v444
    %v704 = vunpack.c.l.b16 %v445
    %v705 = vunpack.c.l.b16 %v446
    %v706 = vunpack.c.l.b16 %v447
    %v707 = vunpack.c.l.b16 %v448
    %v708 = vunpack.c.l.b16 %v449
    %v709 = vunpack.c.l.b16 %v450
    %v710 = vunpack.c.l.b16 %v451
    %v711 = vunpack.c.l.b16 %v452
    %v712 = vunpack.c.l.b16 %v453
    %v713 = vunpack.c.l.b16 %v454
    %v714 = vunpack.c.l.b16 %v455
    %v715 = vunpack.c.l.b16 %v456
    %v716 = vunpack.c.l.b16 %v457
    %v717 = vunpack.c.l.b16 %v458
    %v718 = vunpack.c.l.b16 %v459
    %v719 = vunpack.c.l.b16 %v460
    %v720 = vunpack.c.l.b16 %v461
    %v721 = vunpack.c.l.b16 %v462
    %v722 = vunpack.c.l.b16 %v463
    %v723 = vunpack.c.l.b16 %v464
    %v724 = vunpack.c.l.b16 %v465
    %v725 = vunpack.c.l.b16 %v466
    %v726 = vunpack.c.l.b16 %v467
    %v727 = vunpack.c.l.b16 %v468
    %v728 = vunpack.c.l.b16 %v469
    %v729 = vunpack.c.l.b16 %v470
    %v730 = vunpack.c.l.b16 %v471
    %v731 = vunpack.c.l.b16 %v472
    %v732 = vunpack.c.l.b16 %v473
    %v733 = vunpack.c.l.b16 %v474
    %v734 = vunpack.c.l.b16 %v475
    %v735 = vunpack.c.l.b16 %v476
    %v736 = vunpack.c.l.b16 %v477
    %v737 = vunpack.c.l.b16 %v478
    %v738 = vunpack.c.l.b16 %v479
    %v739 = vunpack.c.l.b16 %v480
    %v740 = vunpack.c.l.b16 %v481
    %v741 = vunpack.c.l.b16 %v482
    %v742 = vunpack.c.l.b16 %v483
    %v743 = vunpack.c.l.b16 %v484
    %v744 = vunpack.c.l.b16 %v485
    %v745 = vunpack.c.l.b16 %v486
    %v746 = vunpack.c.l.b16 %v487
    %v747 = vunpack.c.l.b16 %v488
    %v748 = vunpack.c.l.b16 %v489
    %v749 = vunpack.c.l.b16 %v490
    %v750 = vunpack.c.l.b16 %v491
    %v751 = vunpack.c.l.b16 %v492
    %v752 = vunpack.c.l.b16 %v493
    %v753 = vunpack.c.l.b16 %v494
    %v754 = vunpack.c.l.b16 %v495
    %v755 = vunpack.c.l.b16 %v496
    %v756 = vunpack.c.l.b16 %v497
    %v757 = vunpack.c.l.b16 %v498
    %v758 = vunpack.c.l.b16 %v499
    %v759 = vunpack.c.l.b16 %v500
    %v760 = vunpack.c.l.b16 %v501
    %v761 = vunpack.c.l.b16 %v502
    %v762 = vunpack.c.l.b16 %v503
    %v763 = vunpack.c.l.b16 %v504
    %v764 = vunpack.c.l.b16 %v505
    %v765 = vunpack.c.l.b16 %v506
    %v766 = vunpack.c.l.b16 %v507
    %v767 = vunpack.c.l.b16 %v508
    %v768 = vunpack.c.l.b16 %v509
    %v769 = vunpack.c.l.b16 %v510
    %v770 = vunpack.c.l.b16 %v511
    %v771 = vunpack.c.l.b16 %v512
    %v772 = vunpack.c.l.b16 %v513
    %v773 = vunpack.c.l.b16 %v514
    %v774 = vunpack.c.l.b16 %v515
    %v775 = vunpack.c.l.b16 %v516
    %v776 = vunpack.c.l.b16 %v517
    %v777 = vunpack.c.l.b16 %v518
    %v778 = vunpack.c.l.b16 %v519
    %v779 = vunpack.c.l.b16 %v520
    %v780 = vunpack.c.l.b16 %v521
    %v781 = vunpack.c.l.b16 %v522
    %v782 = vpack.c.b16 %v687, %v686
    %v783 = vpack.c.b16 %v689, %v688
    %v784 = vpack.c.b16 %v691, %v690
    %v785 = vpack.c.b16 %v693, %v692
    %v786 = vpack.c.b16 %v695, %v694
    %v787 = vpack.c.b16 %v697, %v696
    %v788 = vpack.c.b16 %v699, %v698
    %v789 = vpack.c.b16 %v701, %v700
    %v790 = vpack.c.b16 %v703, %v702
    %v791 = vpack.c.b16 %v705, %v704
    %v792 = vpack.c.b16 %v707, %v706
    %v793 = vpack.c.b16 %v709, %v708
    %v794 = vpack.c.b16 %v711, %v710
    %v795 = vpack.c.b16 %v713, %v712
    %v796 = vpack.c.b16 %v715, %v714
    %v797 = vpack.c.b16 %v717, %v716
    %v798 = vpack.c.b16 %v719, %v718
    %v799 = vpack.c.b16 %v721, %v720
    %v800 = vpack.c.b16 %v723, %v722
    %v801 = vpack.c.b16 %v725, %v724
    %v802 = vpack.c.b16 %v727, %v726
    %v803 = vpack.c.b16 %v729, %v728
    %v804 = vpack.c.b16 %v731, %v730
    %v805 = vpack.c.b16 %v733, %v732
    %v806 = vpack.c.b16 %v735, %v734
    %v807 = vpack.c.b16 %v737, %v736
    %v808 = vpack.c.b16 %v739, %v738
    %v809 = vpack.c.b16 %v741, %v740
    %v810 = vpack.c.b16 %v743, %v742
    %v811 = vpack.c.b16 %v745, %v744
    %v812 = vpack.c.b16 %v747, %v746
    %v813 = vpack.c.b16 %v749, %v748
    %v814 = vpack.c.b16 %v751, %v750
    %v815 = vpack.c.b16 %v753, %v752
    %v816 = vpack.c.b16 %v755, %v754
    %v817 = vpack.c.b16 %v757, %v756
    %v818 = vpack.c.b16 %v759, %v758
    %v819 = vpack.c.b16 %v761, %v760
    %v820 = vpack.c.b16 %v763, %v762
    %v821 = vpack.c.b16 %v765, %v764
    %v822 = vpack.c.b16 %v767, %v766
    %v823 = vpack.c.b16 %v769, %v768
    %v824 = vpack.c.b16 %v771, %v770
    %v825 = vpack.c.b16 %v773, %v772
    %v826 = vpack.c.b16 %v775, %v774
    %v827 = vpack.c.b16 %v777, %v776
    %v828 = vpack.c.b16 %v779, %v778
    %v829 = vpack.c.b16 %v781, %v780
    %878 = vmatprep.subr.bf16.mxu0 0
    %879 = vmatpush1.bf16.msra.mxu0 %v789
    %880 = vmatprep.subr.bf16.mxu0 0
    %881 = vmatpush1.bf16.msra.mxu0 %v788
    %882 = vmatprep.subr.bf16.mxu0 0
    %883 = vmatpush1.bf16.msra.mxu0 %v787
    %884 = vmatprep.subr.bf16.mxu0 0
    %885 = vmatpush1.bf16.msra.mxu0 %v786
    %886 = vmatprep.subr.bf16.mxu0 0
    %887 = vmatpush1.bf16.msra.mxu0 %v785
    %888 = vmatprep.subr.bf16.mxu0 0
    %889 = vmatpush1.bf16.msra.mxu0 %v784
    %890 = vmatprep.subr.bf16.mxu0 0
    %891 = vmatpush1.bf16.msra.mxu0 %v783
    %892 = vmatprep.subr.bf16.mxu0 0
    %893 = vmatpush1.bf16.msra.mxu0 %v782
    %894 = vmatprep.subr.bf16.mxu0 0
    %895 = vmatpush2.bf16.msra.mxu0 %v797
    %896 = vmatprep.subr.bf16.mxu0 0
    %897 = vmatpush2.bf16.msra.mxu0 %v796
    %898 = vmatprep.subr.bf16.mxu0 0
    %899 = vmatpush2.bf16.msra.mxu0 %v795
    %900 = vmatprep.subr.bf16.mxu0 0
    %901 = vmatpush2.bf16.msra.mxu0 %v794
    %902 = vmatprep.subr.bf16.mxu0 0
    %903 = vmatpush2.bf16.msra.mxu0 %v793
    %904 = vmatprep.subr.bf16.mxu0 0
    %905 = vmatpush2.bf16.msra.mxu0 %v792
    %906 = vmatprep.subr.bf16.mxu0 0
    %907 = vmatpush2.bf16.msra.mxu0 %v791
    %908 = vmatprep.subr.bf16.mxu0 0
    %909 = vmatpush2.bf16.msra.mxu0 %v790
    %910 = vmatprep.mubr.bf16.mxu0 %v567
    %911 = vmatmul.mubr.bf16.gmra.mxu0 %v566
    %v912 = vpop.f32.mrf.mxu0
    %v913 = vadd.f32 %v528, %v912
    %v914 = vpop.f32.mrf.mxu0
    %v915 = vpop.f32.mrf.mxu0
    %v916 = vadd.f32 %v528, %v915
    %v917 = vpop.f32.mrf.mxu0
    %918 = vmatprep.mubr.bf16.mxu0 %v573
    %919 = vmatmul.mubr.bf16.gmra.mxu0 %v572
    %v920 = vpop.f32.mrf.mxu0
    %v921 = vadd.f32 %v528, %v920
    %v922 = vpop.f32.mrf.mxu0
    %v923 = vpop.f32.mrf.mxu0
    %v924 = vadd.f32 %v528, %v923
    %v925 = vpop.f32.mrf.mxu0
    %926 = vdwg.mxu0
    %927 = vmatprep.subr.bf16.mxu0 0
    %928 = vmatpush1.bf16.msra.mxu0 %v805
    %929 = vmatprep.subr.bf16.mxu0 0
    %930 = vmatpush1.bf16.msra.mxu0 %v804
    %931 = vmatprep.subr.bf16.mxu0 0
    %932 = vmatpush1.bf16.msra.mxu0 %v803
    %933 = vmatprep.subr.bf16.mxu0 0
    %934 = vmatpush1.bf16.msra.mxu0 %v802
    %935 = vmatprep.subr.bf16.mxu0 0
    %936 = vmatpush1.bf16.msra.mxu0 %v801
    %937 = vmatprep.subr.bf16.mxu0 0
    %938 = vmatpush1.bf16.msra.mxu0 %v800
    %939 = vmatprep.subr.bf16.mxu0 0
    %940 = vmatpush1.bf16.msra.mxu0 %v799
    %941 = vmatprep.subr.bf16.mxu0 0
    %942 = vmatpush1.bf16.msra.mxu0 %v798
    %943 = vmatprep.subr.bf16.mxu0 0
    %944 = vmatpush2.bf16.msra.mxu0 %v813
    %945 = vmatprep.subr.bf16.mxu0 0
    %946 = vmatpush2.bf16.msra.mxu0 %v812
    %947 = vmatprep.subr.bf16.mxu0 0
    %948 = vmatpush2.bf16.msra.mxu0 %v811
    %949 = vmatprep.subr.bf16.mxu0 0
    %950 = vmatpush2.bf16.msra.mxu0 %v810
    %951 = vmatprep.subr.bf16.mxu0 0
    %952 = vmatpush2.bf16.msra.mxu0 %v809
    %953 = vmatprep.subr.bf16.mxu0 0
    %954 = vmatpush2.bf16.msra.mxu0 %v808
    %955 = vmatprep.subr.bf16.mxu0 0
    %956 = vmatpush2.bf16.msra.mxu0 %v807
    %957 = vmatprep.subr.bf16.mxu0 0
    %958 = vmatpush2.bf16.msra.mxu0 %v806
    %959 = vmatprep.mubr.bf16.mxu0 %v569
    %960 = vmatmul.mubr.bf16.gmra.mxu0 %v568
    %v961 = vpop.f32.mrf.mxu0
    %v962 = vadd.f32 %v913, %v961
    %v963 = vpop.f32.mrf.mxu0
    %v964 = vpop.f32.mrf.mxu0
    %v965 = vadd.f32 %v916, %v964
    %v966 = vpop.f32.mrf.mxu0
    %967 = vmatprep.mubr.bf16.mxu0 %v575
    %968 = vmatmul.mubr.bf16.gmra.mxu0 %v574
    %v969 = vpop.f32.mrf.mxu0
    %v970 = vadd.f32 %v921, %v969
    %v971 = vpop.f32.mrf.mxu0
    %v972 = vpop.f32.mrf.mxu0
    %v973 = vadd.f32 %v924, %v972
    %v974 = vpop.f32.mrf.mxu0
    %975 = vdwg.mxu0
    %976 = vmatprep.subr.bf16.mxu0 0
    %977 = vmatpush1.bf16.msra.mxu0 %v821
    %978 = vmatprep.subr.bf16.mxu0 0
    %979 = vmatpush1.bf16.msra.mxu0 %v820
    %980 = vmatprep.subr.bf16.mxu0 0
    %981 = vmatpush1.bf16.msra.mxu0 %v819
    %982 = vmatprep.subr.bf16.mxu0 0
    %983 = vmatpush1.bf16.msra.mxu0 %v818
    %984 = vmatprep.subr.bf16.mxu0 0
    %985 = vmatpush1.bf16.msra.mxu0 %v817
    %986 = vmatprep.subr.bf16.mxu0 0
    %987 = vmatpush1.bf16.msra.mxu0 %v816
    %988 = vmatprep.subr.bf16.mxu0 0
    %989 = vmatpush1.bf16.msra.mxu0 %v815
    %990 = vmatprep.subr.bf16.mxu0 0
    %991 = vmatpush1.bf16.msra.mxu0 %v814
    %992 = vmatprep.subr.bf16.mxu0 0
    %993 = vmatpush2.bf16.msra.mxu0 %v829
    %994 = vmatprep.subr.bf16.mxu0 0
    %995 = vmatpush2.bf16.msra.mxu0 %v828
    %996 = vmatprep.subr.bf16.mxu0 0
    %997 = vmatpush2.bf16.msra.mxu0 %v827
    %998 = vmatprep.subr.bf16.mxu0 0
    %999 = vmatpush2.bf16.msra.mxu0 %v826
    %1000 = vmatprep.subr.bf16.mxu0 0
    %1001 = vmatpush2.bf16.msra.mxu0 %v825
    %1002 = vmatprep.subr.bf16.mxu0 0
    %1003 = vmatpush2.bf16.msra.mxu0 %v824
    %1004 = vmatprep.subr.bf16.mxu0 0
    %1005 = vmatpush2.bf16.msra.mxu0 %v823
    %1006 = vmatprep.subr.bf16.mxu0 0
    %1007 = vmatpush2.bf16.msra.mxu0 %v822
    %1008 = vmatprep.mubr.bf16.mxu0 %v571
    %1009 = vmatmul.mubr.bf16.gmra.mxu0 %v570
    %v1010 = vpop.f32.mrf.mxu0
    %v1011 = vadd.f32 %v962, %v1010
    %v1012 = vpop.f32.mrf.mxu0
    %v1013 = vpop.f32.mrf.mxu0
    %v1014 = vadd.f32 %v965, %v1013
    %v1015 = vpop.f32.mrf.mxu0
    %1016 = vmatprep.mubr.bf16.mxu0 %v577
    %1017 = vmatmul.mubr.bf16.gmra.mxu0 %v576
    %v1018 = vpop.f32.mrf.mxu0
    %v1019 = vadd.f32 %v970, %v1018
    %v1020 = vpop.f32.mrf.mxu0
    %v1021 = vpop.f32.mrf.mxu0
    %v1022 = vadd.f32 %v973, %v1021
    %v1023 = vpop.f32.mrf.mxu0
    %1024 = vdwg.mxu0
    %v1025 = vmax.f32 %v1011, 0.0
    %v1026 = vmax.f32 %v1014, 0.0
    %v1027 = vmax.f32 %v1019, 0.0
    %v1028 = vmax.f32 %v1022, 0.0
    %v1029 = vpack.c.bf16 %v1026, %v1025
    %v1030 = vpack.c.bf16 %v1028, %v1027
    %v1031 = vld [vmem:[%s2] sm:$0xf]
    %v1032 = vld [vmem:[%s2 + $0x4] sm:$0xf]
    %v1033 = vld [vmem:[%s2 + $0x8] sm:$0xf]
    %v1034 = vld [vmem:[%s2 + $0xc] sm:$0xf]
    %v1035 = vld [vmem:[%s2 + $0x10] sm:$0xf]
    %v1036 = vld [vmem:[%s2 + $0x14] sm:$0xf]
    %v1037 = vld [vmem:[%s2 + $0x18] sm:$0xf]
    %v1038 = vld [vmem:[%s2 + $0x1c] sm:$0xf]
    %v1039 = vld [vmem:[%s2 + $0x20] sm:$0xf]
    %v1040 = vld [vmem:[%s2 + $0x24] sm:$0xf]
    %v1041 = vld [vmem:[%s2 + $0x28] sm:$0xf]
    %v1042 = vld [vmem:[%s2 + $0x2c] sm:$0xf]
    %v1043 = vld [vmem:[%s2 + $0x30] sm:$0xf]
    %v1044 = vld [vmem:[%s2 + $0x34] sm:$0xf]
    %v1045 = vld [vmem:[%s2 + $0x38] sm:$0xf]
    %v1046 = vld [vmem:[%s2 + $0x3c] sm:$0xf]
    %v1047 = vld [vmem:[%s3] sm:$0x1]
    %v1049 = vlaneseq
    %v1050 = vshrl.u32 %v1049, 7
    %v1051 = vsub.s32 0, %v1050
    %v1052 = vrot.slane %v1047, %v1051
    %v1070 = vunpack.c.l.b16 %v1031
    %v1071 = vunpack.c.l.b16 %v1032
    %v1072 = vunpack.c.l.b16 %v1033
    %v1073 = vunpack.c.l.b16 %v1034
    %v1074 = vunpack.c.l.b16 %v1035
    %v1075 = vunpack.c.l.b16 %v1036
    %v1076 = vunpack.c.l.b16 %v1037
    %v1077 = vunpack.c.l.b16 %v1038
    %v1078 = vunpack.c.l.b16 %v1039
    %v1079 = vunpack.c.l.b16 %v1040
    %v1080 = vunpack.c.l.b16 %v1041
    %v1081 = vunpack.c.l.b16 %v1042
    %v1082 = vunpack.c.l.b16 %v1043
    %v1083 = vunpack.c.l.b16 %v1044
    %v1084 = vunpack.c.l.b16 %v1045
    %v1085 = vunpack.c.l.b16 %v1046
    %v1086 = vpack.c.b16 %v1071, %v1070
    %v1087 = vpack.c.b16 %v1073, %v1072
    %v1088 = vpack.c.b16 %v1075, %v1074
    %v1089 = vpack.c.b16 %v1077, %v1076
    %v1090 = vpack.c.b16 %v1079, %v1078
    %v1091 = vpack.c.b16 %v1081, %v1080
    %v1092 = vpack.c.b16 %v1083, %v1082
    %v1093 = vpack.c.b16 %v1085, %v1084
    %1102 = vmatprep.subr.bf16.mxu0 0
    %1103 = vmatpush1.bf16.msra.mxu0 %v1093
    %1104 = vmatprep.subr.bf16.mxu0 0
    %1105 = vmatpush1.bf16.msra.mxu0 %v1092
    %1106 = vmatprep.subr.bf16.mxu0 0
    %1107 = vmatpush1.bf16.msra.mxu0 %v1091
    %1108 = vmatprep.subr.bf16.mxu0 0
    %1109 = vmatpush1.bf16.msra.mxu0 %v1090
    %1110 = vmatprep.subr.bf16.mxu0 0
    %1111 = vmatpush1.bf16.msra.mxu0 %v1089
    %1112 = vmatprep.subr.bf16.mxu0 0
    %1113 = vmatpush1.bf16.msra.mxu0 %v1088
    %1114 = vmatprep.subr.bf16.mxu0 0
    %1115 = vmatpush1.bf16.msra.mxu0 %v1087
    %1116 = vmatprep.subr.bf16.mxu0 0
    %1117 = vmatpush1.bf16.msra.mxu0 %v1086
    %1118 = vmatprep.subr.bf16.mxu0 0
    %1119 = vmatpush2.bf16.msra.mxu0 0
    %1120 = vmatprep.subr.bf16.mxu0 0
    %1121 = vmatpush2.bf16.msra.mxu0 0
    %1122 = vmatprep.subr.bf16.mxu0 0
    %1123 = vmatpush2.bf16.msra.mxu0 0
    %1124 = vmatprep.subr.bf16.mxu0 0
    %1125 = vmatpush2.bf16.msra.mxu0 0
    %1126 = vmatprep.subr.bf16.mxu0 0
    %1127 = vmatpush2.bf16.msra.mxu0 0
    %1128 = vmatprep.subr.bf16.mxu0 0
    %1129 = vmatpush2.bf16.msra.mxu0 0
    %1130 = vmatprep.subr.bf16.mxu0 0
    %1131 = vmatpush2.bf16.msra.mxu0 0
    %1132 = vmatprep.subr.bf16.mxu0 0
    %1133 = vmatpush2.bf16.msra.mxu0 0
    %1134 = vmatprep.mubr.bf16.mxu0 0
    %1135 = vmatmul.mubr.bf16.gmra.mxu0 %v1029
    %v1136 = vpop.f32.mrf.mxu0
    %v1137 = vadd.f32 %v1052, %v1136
    %v1138 = vpop.f32.mrf.mxu0
    %v1139 = vpop.f32.mrf.mxu0
    %v1140 = vadd.f32 %v1052, %v1139
    %v1141 = vpop.f32.mrf.mxu0
    %1142 = vmatprep.mubr.bf16.mxu0 0
    %1143 = vmatmul.mubr.bf16.gmra.mxu0 %v1030
    %v1144 = vpop.f32.mrf.mxu0
    %v1145 = vadd.f32 %v1052, %v1144
    %v1146 = vpop.f32.mrf.mxu0
    %v1147 = vpop.f32.mrf.mxu0
    %v1148 = vadd.f32 %v1052, %v1147
    %v1149 = vpop.f32.mrf.mxu0
    %1150 = vdwg.mxu0
    %1151 = vst [vmem:[%s6] sm:$0xff] %v1137
    %1152 = vst [vmem:[%s6 + $0x8] sm:$0xff] %v1140
    %1153 = vst [vmem:[%s6 + $0x10] sm:$0xff] %v1145
    %1154 = vst [vmem:[%s6 + $0x18] sm:$0xff] %v1148
    // Predicated region
    $region22: #{image_encoder.2} parent=1 // pred_check
      _
    $region23: #{image_encoder.2} parent=1 // pred_check_branch
      %1156 = sbr.rel (0) target = $region25
    $region24: #{image_encoder.2} parent=1 // pred_region
      _
    $region25: #{image_encoder.2} parent=1 // pred_fallthru
      _
    // Predicated region
    $region26: #{image_encoder.2} parent=1 // pred_check
      _
    $region27: #{image_encoder.2} parent=1 // pred_check_branch
      %1158 = sbr.rel (0) target = $region29
    $region28: #{image_encoder.2} parent=1 // pred_region
      _
    $region29: #{image_encoder.2} parent=1 // pred_fallthru
      _

</llo_original>
